<compile_context>
chip_gen: v7x
topology: tpu7x:2x2x1
jax: 0.10.0
libtpu: 0.0.40
codegen_flags: <defaults>
</compile_context>

<pallas_src>
import functools

import jax
import jax.numpy as jnp
from jax.experimental import pallas as pl
from jax.experimental.pallas import tpu as pltpu


_FUSE_VOCAB_LIMIT = 1024   # fuse the gathers when the vocab is this small
_LANE = 128
_SUBLANE = 8


def _round_up(x, m):
    return (x + m - 1) // m * m


def _log_sigmoid(x):
    # Numerically stable logsigmoid(x) = min(x, 0) - log1p(exp(-|x|)).
    return jnp.minimum(x, 0.0) - jnp.log1p(jnp.exp(-jnp.abs(x)))


# ---------------------------------------------------------------------------
# Kernels
# ---------------------------------------------------------------------------


def _skipgram_fused_kernel(cen_ids_ref, ctx_ids_ref, in_tab_ref, out_tab_t_ref,
                           loss_ref, *, num_pos):
    """Fused-gather path (small vocab): only ids + the tables touch HBM.

    cen_ids_ref   : [tb, 1]   int32   center-word ids
    ctx_ids_ref   : [tb, C]   int32   pos ++ neg context ids
    in_tab_ref    : [Vp, D]   f32     in_embed.weight (vocab zero-padded)
    out_tab_t_ref : [D, Vp]   f32     out_embed.weight, transposed
    loss_ref      : [1, tb]   f32     per-sample loss, batch on the lane axis
    """
    tb = cen_ids_ref.shape[0]
    num_ctx = ctx_ids_ref.shape[1]
    vp = in_tab_ref.shape[0]

    iota_v = jax.lax.broadcasted_iota(jnp.int32, (tb, vp), 1)            # [tb, Vp]

    # Exact gather of the center rows via one-hot matmul (one 1.0 per row).
    cen_onehot = (cen_ids_ref[...] == iota_v).astype(in_tab_ref.dtype)   # [tb, Vp]
    cen_emb = jnp.dot(cen_onehot, in_tab_ref[...],
                      preferred_element_type=jnp.float32)                # [tb, D]

    # Scores of every center word against the whole (padded) vocab.
    scores = jnp.dot(cen_emb, out_tab_t_ref[...],
                     preferred_element_type=jnp.float32)                 # [tb, Vp]

    # How often each vocab id appears as a positive / negative context word.
    ctx_ids = ctx_ids_ref[...]                                           # [tb, C]
    cnt_pos = jnp.zeros((tb, vp), jnp.float32)
    cnt_neg = jnp.zeros((tb, vp), jnp.float32)
    for c in range(num_ctx):                  # C is small & static -> unrolled
        hit = (ctx_ids[:, c:c + 1] == iota_v).astype(jnp.float32)        # [tb, Vp]
        if c < num_pos:
            cnt_pos = cnt_pos + hit
        else:
            cnt_neg = cnt_neg + hit

    # loss = -(sum logsigmoid(pos_dot) + sum logsigmoid(-neg_dot)) rewritten as
    # count-weighted sums over the vocab axis (padded vocab rows get no hits).
    total = cnt_pos * _log_sigmoid(scores) + cnt_neg * _log_sigmoid(-scores)
    loss_ref[0, :] = -jnp.sum(total, axis=1)                             # lane-dense


def _skipgram_stream_kernel(cen_ref, ctx_ref, loss_ref, *, num_pos):
    """Fallback path (large vocab): stream pre-gathered bf16 embeddings.

    cen_ref  : [tb, D]     bf16   center embeddings
    ctx_ref  : [tb, C, D]  bf16   pos ++ neg context embeddings
    loss_ref : [1, tb]     f32
    """
    cen = cen_ref[...].astype(jnp.float32)                               # [tb, D]
    ctx = ctx_ref[...].astype(jnp.float32)                               # [tb, C, D]

    # Per-sample dots: VPU multiply + lane reduce over D.  Deliberately NOT an
    # MXU matmul — C and D are tiny and this path is HBM-bound.
    dot = jnp.sum(ctx * cen[:, None, :], axis=-1)                        # [tb, C]

    # +1 for positive slots, -1 for negative slots (multiply, not select).
    col = jax.lax.broadcasted_iota(jnp.int32, dot.shape, 1)
    sign = jnp.where(col < num_pos, 1.0, -1.0)

    loss_ref[0, :] = -jnp.sum(_log_sigmoid(dot * sign), axis=1)          # lane-dense


# ---------------------------------------------------------------------------
# Tiling helpers
# ---------------------------------------------------------------------------


def _vmem_budget_and_limit():
    """Per-generation VMEM sizing: v5e/v6e have 128 MiB, v7x 64 MiB per TC.
    Fall back to the conservative (v7x) numbers if the query is unavailable."""
    cap = None
    try:
        cap = pltpu.get_tpu_info().vmem_capacity_bytes
    except Exception:
        cap = None
    if cap is not None and cap >= 96 * 1024 * 1024:
        return 40 * 1024 * 1024, 96 * 1024 * 1024        # v5e / v6e
    return 20 * 1024 * 1024, 48 * 1024 * 1024            # v7x (or unknown)


def _choose_tile_b(batch, per_sample_bytes, budget_bytes, min_grid_steps=2):
    """Pick the batch tile and the padded batch size.

    Small batches use a single sublane-aligned tile.  Larger batches get the
    biggest multiple of 128 that fits the VMEM budget, capped so the grid has
    at least `min_grid_steps` steps (lets v7x's two TensorCores split the
    "parallel" batch axis; harmless on single-core v5e/v6e).
    """
    if batch <= _LANE:
        tb = _round_up(max(batch, _SUBLANE), _SUBLANE)
        return tb, tb
    cap = (budget_bytes // max(per_sample_bytes, 1)) // _LANE * _LANE
    tb = max(_LANE, min(1024, cap))
    if min_grid_steps > 1:
        tb = min(tb, max(_LANE, _round_up(pl.cdiv(batch, min_grid_steps), _LANE)))
    return tb, _round_up(batch, tb)


def _pad_rows(x, rows):
    if x.shape[0] == rows:
        return x
    pad = [(0, rows - x.shape[0])] + [(0, 0)] * (x.ndim - 1)
    return jnp.pad(x, pad)


# ---------------------------------------------------------------------------
# Forward pass
# ---------------------------------------------------------------------------


def skipgram_neg_forward(in_weight, out_weight, cen_ids, pos_ids, neg_ids,
                         *, fuse_gather=None):
    """Forward pass of SkipGram_neg.

    in_weight  : [V, D] float32   (in_embed.weight)
    out_weight : [V, D] float32   (out_embed.weight)
    cen_ids    : [B]    int,  pos_ids : [B, P] int,  neg_ids : [B, N] int
    returns    : [B]    float32   per-sample negative loss
    """
    batch = cen_ids.shape[0]
    num_pos = pos_ids.shape[1]
    vocab, dim = in_weight.shape
    num_ctx = num_pos + neg_ids.shape[1]

    cen_ids = cen_ids.astype(jnp.int32)
    ctx_ids = jnp.concatenate([pos_ids, neg_ids], axis=1).astype(jnp.int32)

    budget, vmem_limit = _vmem_budget_and_limit()
    if fuse_gather is None:
        fuse_gather = vocab <= _FUSE_VOCAB_LIMIT

    dim_vmem = _round_up(dim, _LANE)     # lane-padded width inside VMEM

    if fuse_gather:
        # ---- fused path: ids in, loss out; tables stay resident in VMEM ----
        vocab_p = _round_up(vocab, _LANE)
        in_tab = in_weight.astype(jnp.float32)
        out_tab_t = out_weight.astype(jnp.float32).T                  # [D, V]
        if vocab_p != vocab:
            in_tab = jnp.pad(in_tab, ((0, vocab_p - vocab), (0, 0)))
            out_tab_t = jnp.pad(out_tab_t, ((0, 0), (0, vocab_p - vocab)))

        # Double-buffered id blocks + ~8 (tb, Vp) f32 in-kernel temporaries.
        per_sample = 2 * 2 * _LANE * 4 + 8 * vocab_p * 4
        tb, batch_p = _choose_tile_b(batch, per_sample, budget)

        cen2 = _pad_rows(cen_ids[:, None], batch_p)                   # [Bp, 1]
        ctx2 = _pad_rows(ctx_ids, batch_p)                            # [Bp, C]

        loss = pl.pallas_call(
            functools.partial(_skipgram_fused_kernel, num_pos=num_pos),
            out_shape=jax.ShapeDtypeStruct((1, batch_p), jnp.float32),
            grid_spec=pltpu.PrefetchScalarGridSpec(
                num_scalar_prefetch=0,
                grid=(batch_p // tb,),
                in_specs=[
                    pl.BlockSpec((tb, 1), lambda i: (i, 0)),          # center ids
                    pl.BlockSpec((tb, num_ctx), lambda i: (i, 0)),    # context ids
                    pl.BlockSpec((vocab_p, dim), lambda i: (0, 0)),   # in table
                    pl.BlockSpec((dim, vocab_p), lambda i: (0, 0)),   # out table^T
                ],
                out_specs=pl.BlockSpec((1, tb), lambda i: (0, i)),
            ),
            compiler_params=pltpu.CompilerParams(
                dimension_semantics=("parallel",),
                vmem_limit_bytes=vmem_limit,
            ),
        )(cen2, ctx2, in_tab, out_tab_t)
        return loss[0, :batch]

    # ---- fallback path: XLA gathers + bf16 streaming kernel -----------------
    # TODO(synk): fuse the gather for large vocabularies too (scalar-prefetched
    # ids + per-row make_async_copy DMAs from the HBM-resident table) so the
    # gathered [B, C, D] tensor is never materialised in HBM and re-read.
    per_sample = (2 * (num_ctx + 1) * dim_vmem * 2      # bf16 inputs, x2 buffers
                  + 2 * num_ctx * dim_vmem * 4          # f32 upcast + product temp
                  + 2 * dim_vmem * 4)
    tb, batch_p = _choose_tile_b(batch, per_sample, budget)

    cen2 = _pad_rows(cen_ids, batch_p)                                # [Bp]
    ctx2 = _pad_rows(ctx_ids, batch_p)                                # [Bp, C]
    cen_emb = jnp.take(in_weight.astype(jnp.bfloat16), cen2, axis=0)    # [Bp, D]
    ctx_emb = jnp.take(out_weight.astype(jnp.bfloat16), ctx2, axis=0)   # [Bp, C, D]

    loss = pl.pallas_call(
        functools.partial(_skipgram_stream_kernel, num_pos=num_pos),
        out_shape=jax.ShapeDtypeStruct((1, batch_p), jnp.float32),
        grid_spec=pltpu.PrefetchScalarGridSpec(
            num_scalar_prefetch=0,
            grid=(batch_p // tb,),
            in_specs=[
                pl.BlockSpec((tb, dim), lambda i: (i, 0)),
                pl.BlockSpec((tb, num_ctx, dim), lambda i: (i, 0, 0)),
            ],
            out_specs=pl.BlockSpec((1, tb), lambda i: (0, i)),
        ),
        compiler_params=pltpu.CompilerParams(
            dimension_semantics=("parallel",),
            vmem_limit_bytes=vmem_limit,
        ),
    )(cen_emb, ctx_emb)
    return loss[0, :batch]


# ---------------------------------------------------------------------------
# Self-test
# ---------------------------------------------------------------------------


if __name__ == "__main__":
    key = jax.random.PRNGKey(0)

    EMBED = 32
    WINDOW2 = 8          # window_size * 2
    K = 5
    NEG = WINDOW2 * K    # 40

    def reference(in_w, out_w, cen, pos, neg):
        cen_e = jnp.take(in_w, cen, axis=0)
        pos_e = jnp.take(out_w, pos, axis=0)
        neg_e = jnp.take(out_w, neg, axis=0)
        pos_dot = jnp.einsum('bpd,bd->bp', pos_e, cen_e)
        neg_dot = jnp.einsum('bnd,bd->bn', neg_e, cen_e)
        return -(jax.nn.log_sigmoid(pos_dot).sum(1)
                 + jax.nn.log_sigmoid(-neg_dot).sum(1))

    # (vocab, batch): small single-tile fused path, multi-step fused path,
    # and the large-vocab bf16 fallback with a non-multiple-of-128 batch.
    for vocab, batch in ((50, 8), (50, 512), (2000, 300)):
        kw = jax.random.fold_in(key, vocab)
        in_weight = jax.random.normal(jax.random.fold_in(kw, 1),
                                      (vocab, EMBED), dtype=jnp.float32)
        out_weight = jax.random.normal(jax.random.fold_in(kw, 2),
                                       (vocab, EMBED), dtype=jnp.float32)
        kb = jax.random.fold_in(key, 1000 + batch)
        kc, kp, kn = jax.random.split(kb, 3)
        cen_ids = jax.random.randint(kc, (batch,), 0, vocab, dtype=jnp.int32)
        pos_ids = jax.random.randint(kp, (batch, WINDOW2), 0, vocab, dtype=jnp.int32)
        neg_ids = jax.random.randint(kn, (batch, NEG), 0, vocab, dtype=jnp.int32)

        loss = skipgram_neg_forward(in_weight, out_weight,
                                    cen_ids, pos_ids, neg_ids)
        loss = jax.block_until_ready(loss)
        ref = reference(in_weight, out_weight, cen_ids, pos_ids, neg_ids)

        assert loss.shape == (batch,)
        # bf16 streaming / default-precision MXU => relaxed tolerance.
        assert jnp.allclose(loss, ref, rtol=2e-2, atol=2e-1), (
            vocab, batch, float(jnp.max(jnp.abs(loss - ref))))

    print("KERNEL_OK")
</pallas_src>

<mosaic_0001>
module attributes {stable_mosaic.version = 11 : i64} {
  func.func @_skipgram_fused_kernel(%arg0: i32, %arg1: memref<8x1xi32, #tpu.memory_space<vmem>>, %arg2: memref<8x48xi32, #tpu.memory_space<vmem>>, %arg3: memref<128x32xf32, #tpu.memory_space<vmem>>, %arg4: memref<32x128xf32, #tpu.memory_space<vmem>>, %arg5: memref<1x8xf32, #tpu.memory_space<vmem>>) attributes {dimension_semantics = [#tpu.dimension_semantics<parallel>], iteration_bounds = array<i64: 1>, scalar_prefetch = 0 : i64, scratch_operands = 0 : i64, tpu.core_type = #tpu.core_type<tc>, window_params = [{transform_indices = @transform_0, window_bounds = array<i64: 8, 1>}, {transform_indices = @transform_1, window_bounds = array<i64: 8, 48>}, {pipeline_mode = #tpu.pipeline_mode<synchronous>, transform_indices = @transform_2, window_bounds = array<i64: 128, 32>}, {pipeline_mode = #tpu.pipeline_mode<synchronous>, transform_indices = @transform_3, window_bounds = array<i64: 32, 128>}, {transform_indices = @transform_4, window_bounds = array<i64: 1, 8>}]} {
    %0 = tpu.iota {dimensions = array<i32: 1>} : vector<8x128xi32>
    %c0 = arith.constant 0 : index
    %c0_0 = arith.constant 0 : index
    %1 = vector.load %arg1[%c0, %c0_0] : memref<8x1xi32, #tpu.memory_space<vmem>>, vector<8x1xi32>
    %2 = vector.broadcast %1 : vector<8x1xi32> to vector<8x128xi32>
    %3 = arith.cmpi eq, %2, %0 : vector<8x128xi32>
    %4 = arith.extui %3 : vector<8x128xi1> to vector<8x128xi32>
    %5 = arith.sitofp %4 : vector<8x128xi32> to vector<8x128xf32>
    %c0_1 = arith.constant 0 : index
    %c0_2 = arith.constant 0 : index
    %6 = vector.load %arg3[%c0_1, %c0_2] : memref<128x32xf32, #tpu.memory_space<vmem>>, vector<128x32xf32>
    %cst = arith.constant dense<0.000000e+00> : vector<8x32xf32>
    %7 = tpu.matmul %5, %6, %cst {dimension_numbers = #tpu.dot_dimension_numbers<[1], [0], [0], [1], [0, 0, 1, 1], [], []>} : vector<8x128xf32>, vector<128x32xf32>, vector<8x32xf32> -> vector<8x32xf32>
    %c0_3 = arith.constant 0 : index
    %c0_4 = arith.constant 0 : index
    %8 = vector.load %arg4[%c0_3, %c0_4] : memref<32x128xf32, #tpu.memory_space<vmem>>, vector<32x128xf32>
    %cst_5 = arith.constant dense<0.000000e+00> : vector<8x128xf32>
    %9 = tpu.matmul %7, %8, %cst_5 {dimension_numbers = #tpu.dot_dimension_numbers<[1], [0], [0], [1], [0, 0, 1, 1], [], []>} : vector<8x32xf32>, vector<32x128xf32>, vector<8x128xf32> -> vector<8x128xf32>
    %c0_6 = arith.constant 0 : index
    %c0_7 = arith.constant 0 : index
    %10 = vector.load %arg2[%c0_6, %c0_7] : memref<8x48xi32, #tpu.memory_space<vmem>>, vector<8x48xi32>
    %cst_8 = arith.constant 0.000000e+00 : f32
    %11 = vector.broadcast %cst_8 : f32 to vector<8x128xf32>
    %cst_9 = arith.constant 0.000000e+00 : f32
    %12 = vector.broadcast %cst_9 : f32 to vector<8x128xf32>
    %13 = vector.extract_strided_slice %10 {offsets = [0, 0], sizes = [8, 1], strides = [1, 1]} : vector<8x48xi32> to vector<8x1xi32>
    %14 = vector.broadcast %13 : vector<8x1xi32> to vector<8x128xi32>
    %15 = arith.cmpi eq, %14, %0 : vector<8x128xi32>
    %16 = arith.extui %15 : vector<8x128xi1> to vector<8x128xi32>
    %17 = arith.sitofp %16 : vector<8x128xi32> to vector<8x128xf32>
    %18 = arith.addf %11, %17 : vector<8x128xf32>
    %19 = vector.extract_strided_slice %10 {offsets = [0, 1], sizes = [8, 1], strides = [1, 1]} : vector<8x48xi32> to vector<8x1xi32>
    %20 = vector.broadcast %19 : vector<8x1xi32> to vector<8x128xi32>
    %21 = arith.cmpi eq, %20, %0 : vector<8x128xi32>
    %22 = arith.extui %21 : vector<8x128xi1> to vector<8x128xi32>
    %23 = arith.sitofp %22 : vector<8x128xi32> to vector<8x128xf32>
    %24 = arith.addf %18, %23 : vector<8x128xf32>
    %25 = vector.extract_strided_slice %10 {offsets = [0, 2], sizes = [8, 1], strides = [1, 1]} : vector<8x48xi32> to vector<8x1xi32>
    %26 = vector.broadcast %25 : vector<8x1xi32> to vector<8x128xi32>
    %27 = arith.cmpi eq, %26, %0 : vector<8x128xi32>
    %28 = arith.extui %27 : vector<8x128xi1> to vector<8x128xi32>
    %29 = arith.sitofp %28 : vector<8x128xi32> to vector<8x128xf32>
    %30 = arith.addf %24, %29 : vector<8x128xf32>
    %31 = vector.extract_strided_slice %10 {offsets = [0, 3], sizes = [8, 1], strides = [1, 1]} : vector<8x48xi32> to vector<8x1xi32>
    %32 = vector.broadcast %31 : vector<8x1xi32> to vector<8x128xi32>
    %33 = arith.cmpi eq, %32, %0 : vector<8x128xi32>
    %34 = arith.extui %33 : vector<8x128xi1> to vector<8x128xi32>
    %35 = arith.sitofp %34 : vector<8x128xi32> to vector<8x128xf32>
    %36 = arith.addf %30, %35 : vector<8x128xf32>
    %37 = vector.extract_strided_slice %10 {offsets = [0, 4], sizes = [8, 1], strides = [1, 1]} : vector<8x48xi32> to vector<8x1xi32>
    %38 = vector.broadcast %37 : vector<8x1xi32> to vector<8x128xi32>
    %39 = arith.cmpi eq, %38, %0 : vector<8x128xi32>
    %40 = arith.extui %39 : vector<8x128xi1> to vector<8x128xi32>
    %41 = arith.sitofp %40 : vector<8x128xi32> to vector<8x128xf32>
    %42 = arith.addf %36, %41 : vector<8x128xf32>
    %43 = vector.extract_strided_slice %10 {offsets = [0, 5], sizes = [8, 1], strides = [1, 1]} : vector<8x48xi32> to vector<8x1xi32>
    %44 = vector.broadcast %43 : vector<8x1xi32> to vector<8x128xi32>
    %45 = arith.cmpi eq, %44, %0 : vector<8x128xi32>
    %46 = arith.extui %45 : vector<8x128xi1> to vector<8x128xi32>
    %47 = arith.sitofp %46 : vector<8x128xi32> to vector<8x128xf32>
    %48 = arith.addf %42, %47 : vector<8x128xf32>
    %49 = vector.extract_strided_slice %10 {offsets = [0, 6], sizes = [8, 1], strides = [1, 1]} : vector<8x48xi32> to vector<8x1xi32>
    %50 = vector.broadcast %49 : vector<8x1xi32> to vector<8x128xi32>
    %51 = arith.cmpi eq, %50, %0 : vector<8x128xi32>
    %52 = arith.extui %51 : vector<8x128xi1> to vector<8x128xi32>
    %53 = arith.sitofp %52 : vector<8x128xi32> to vector<8x128xf32>
    %54 = arith.addf %48, %53 : vector<8x128xf32>
    %55 = vector.extract_strided_slice %10 {offsets = [0, 7], sizes = [8, 1], strides = [1, 1]} : vector<8x48xi32> to vector<8x1xi32>
    %56 = vector.broadcast %55 : vector<8x1xi32> to vector<8x128xi32>
    %57 = arith.cmpi eq, %56, %0 : vector<8x128xi32>
    %58 = arith.extui %57 : vector<8x128xi1> to vector<8x128xi32>
    %59 = arith.sitofp %58 : vector<8x128xi32> to vector<8x128xf32>
    %60 = arith.addf %54, %59 : vector<8x128xf32>
    %61 = vector.extract_strided_slice %10 {offsets = [0, 8], sizes = [8, 1], strides = [1, 1]} : vector<8x48xi32> to vector<8x1xi32>
    %62 = vector.broadcast %61 : vector<8x1xi32> to vector<8x128xi32>
    %63 = arith.cmpi eq, %62, %0 : vector<8x128xi32>
    %64 = arith.extui %63 : vector<8x128xi1> to vector<8x128xi32>
    %65 = arith.sitofp %64 : vector<8x128xi32> to vector<8x128xf32>
    %66 = arith.addf %12, %65 : vector<8x128xf32>
    %67 = vector.extract_strided_slice %10 {offsets = [0, 9], sizes = [8, 1], strides = [1, 1]} : vector<8x48xi32> to vector<8x1xi32>
    %68 = vector.broadcast %67 : vector<8x1xi32> to vector<8x128xi32>
    %69 = arith.cmpi eq, %68, %0 : vector<8x128xi32>
    %70 = arith.extui %69 : vector<8x128xi1> to vector<8x128xi32>
    %71 = arith.sitofp %70 : vector<8x128xi32> to vector<8x128xf32>
    %72 = arith.addf %66, %71 : vector<8x128xf32>
    %73 = vector.extract_strided_slice %10 {offsets = [0, 10], sizes = [8, 1], strides = [1, 1]} : vector<8x48xi32> to vector<8x1xi32>
    %74 = vector.broadcast %73 : vector<8x1xi32> to vector<8x128xi32>
    %75 = arith.cmpi eq, %74, %0 : vector<8x128xi32>
    %76 = arith.extui %75 : vector<8x128xi1> to vector<8x128xi32>
    %77 = arith.sitofp %76 : vector<8x128xi32> to vector<8x128xf32>
    %78 = arith.addf %72, %77 : vector<8x128xf32>
    %79 = vector.extract_strided_slice %10 {offsets = [0, 11], sizes = [8, 1], strides = [1, 1]} : vector<8x48xi32> to vector<8x1xi32>
    %80 = vector.broadcast %79 : vector<8x1xi32> to vector<8x128xi32>
    %81 = arith.cmpi eq, %80, %0 : vector<8x128xi32>
    %82 = arith.extui %81 : vector<8x128xi1> to vector<8x128xi32>
    %83 = arith.sitofp %82 : vector<8x128xi32> to vector<8x128xf32>
    %84 = arith.addf %78, %83 : vector<8x128xf32>
    %85 = vector.extract_strided_slice %10 {offsets = [0, 12], sizes = [8, 1], strides = [1, 1]} : vector<8x48xi32> to vector<8x1xi32>
    %86 = vector.broadcast %85 : vector<8x1xi32> to vector<8x128xi32>
    %87 = arith.cmpi eq, %86, %0 : vector<8x128xi32>
    %88 = arith.extui %87 : vector<8x128xi1> to vector<8x128xi32>
    %89 = arith.sitofp %88 : vector<8x128xi32> to vector<8x128xf32>
    %90 = arith.addf %84, %89 : vector<8x128xf32>
    %91 = vector.extract_strided_slice %10 {offsets = [0, 13], sizes = [8, 1], strides = [1, 1]} : vector<8x48xi32> to vector<8x1xi32>
    %92 = vector.broadcast %91 : vector<8x1xi32> to vector<8x128xi32>
    %93 = arith.cmpi eq, %92, %0 : vector<8x128xi32>
    %94 = arith.extui %93 : vector<8x128xi1> to vector<8x128xi32>
    %95 = arith.sitofp %94 : vector<8x128xi32> to vector<8x128xf32>
    %96 = arith.addf %90, %95 : vector<8x128xf32>
    %97 = vector.extract_strided_slice %10 {offsets = [0, 14], sizes = [8, 1], strides = [1, 1]} : vector<8x48xi32> to vector<8x1xi32>
    %98 = vector.broadcast %97 : vector<8x1xi32> to vector<8x128xi32>
    %99 = arith.cmpi eq, %98, %0 : vector<8x128xi32>
    %100 = arith.extui %99 : vector<8x128xi1> to vector<8x128xi32>
    %101 = arith.sitofp %100 : vector<8x128xi32> to vector<8x128xf32>
    %102 = arith.addf %96, %101 : vector<8x128xf32>
    %103 = vector.extract_strided_slice %10 {offsets = [0, 15], sizes = [8, 1], strides = [1, 1]} : vector<8x48xi32> to vector<8x1xi32>
    %104 = vector.broadcast %103 : vector<8x1xi32> to vector<8x128xi32>
    %105 = arith.cmpi eq, %104, %0 : vector<8x128xi32>
    %106 = arith.extui %105 : vector<8x128xi1> to vector<8x128xi32>
    %107 = arith.sitofp %106 : vector<8x128xi32> to vector<8x128xf32>
    %108 = arith.addf %102, %107 : vector<8x128xf32>
    %109 = vector.extract_strided_slice %10 {offsets = [0, 16], sizes = [8, 1], strides = [1, 1]} : vector<8x48xi32> to vector<8x1xi32>
    %110 = vector.broadcast %109 : vector<8x1xi32> to vector<8x128xi32>
    %111 = arith.cmpi eq, %110, %0 : vector<8x128xi32>
    %112 = arith.extui %111 : vector<8x128xi1> to vector<8x128xi32>
    %113 = arith.sitofp %112 : vector<8x128xi32> to vector<8x128xf32>
    %114 = arith.addf %108, %113 : vector<8x128xf32>
    %115 = vector.extract_strided_slice %10 {offsets = [0, 17], sizes = [8, 1], strides = [1, 1]} : vector<8x48xi32> to vector<8x1xi32>
    %116 = vector.broadcast %115 : vector<8x1xi32> to vector<8x128xi32>
    %117 = arith.cmpi eq, %116, %0 : vector<8x128xi32>
    %118 = arith.extui %117 : vector<8x128xi1> to vector<8x128xi32>
    %119 = arith.sitofp %118 : vector<8x128xi32> to vector<8x128xf32>
    %120 = arith.addf %114, %119 : vector<8x128xf32>
    %121 = vector.extract_strided_slice %10 {offsets = [0, 18], sizes = [8, 1], strides = [1, 1]} : vector<8x48xi32> to vector<8x1xi32>
    %122 = vector.broadcast %121 : vector<8x1xi32> to vector<8x128xi32>
    %123 = arith.cmpi eq, %122, %0 : vector<8x128xi32>
    %124 = arith.extui %123 : vector<8x128xi1> to vector<8x128xi32>
    %125 = arith.sitofp %124 : vector<8x128xi32> to vector<8x128xf32>
    %126 = arith.addf %120, %125 : vector<8x128xf32>
    %127 = vector.extract_strided_slice %10 {offsets = [0, 19], sizes = [8, 1], strides = [1, 1]} : vector<8x48xi32> to vector<8x1xi32>
    %128 = vector.broadcast %127 : vector<8x1xi32> to vector<8x128xi32>
    %129 = arith.cmpi eq, %128, %0 : vector<8x128xi32>
    %130 = arith.extui %129 : vector<8x128xi1> to vector<8x128xi32>
    %131 = arith.sitofp %130 : vector<8x128xi32> to vector<8x128xf32>
    %132 = arith.addf %126, %131 : vector<8x128xf32>
    %133 = vector.extract_strided_slice %10 {offsets = [0, 20], sizes = [8, 1], strides = [1, 1]} : vector<8x48xi32> to vector<8x1xi32>
    %134 = vector.broadcast %133 : vector<8x1xi32> to vector<8x128xi32>
    %135 = arith.cmpi eq, %134, %0 : vector<8x128xi32>
    %136 = arith.extui %135 : vector<8x128xi1> to vector<8x128xi32>
    %137 = arith.sitofp %136 : vector<8x128xi32> to vector<8x128xf32>
    %138 = arith.addf %132, %137 : vector<8x128xf32>
    %139 = vector.extract_strided_slice %10 {offsets = [0, 21], sizes = [8, 1], strides = [1, 1]} : vector<8x48xi32> to vector<8x1xi32>
    %140 = vector.broadcast %139 : vector<8x1xi32> to vector<8x128xi32>
    %141 = arith.cmpi eq, %140, %0 : vector<8x128xi32>
    %142 = arith.extui %141 : vector<8x128xi1> to vector<8x128xi32>
    %143 = arith.sitofp %142 : vector<8x128xi32> to vector<8x128xf32>
    %144 = arith.addf %138, %143 : vector<8x128xf32>
    %145 = vector.extract_strided_slice %10 {offsets = [0, 22], sizes = [8, 1], strides = [1, 1]} : vector<8x48xi32> to vector<8x1xi32>
    %146 = vector.broadcast %145 : vector<8x1xi32> to vector<8x128xi32>
    %147 = arith.cmpi eq, %146, %0 : vector<8x128xi32>
    %148 = arith.extui %147 : vector<8x128xi1> to vector<8x128xi32>
    %149 = arith.sitofp %148 : vector<8x128xi32> to vector<8x128xf32>
    %150 = arith.addf %144, %149 : vector<8x128xf32>
    %151 = vector.extract_strided_slice %10 {offsets = [0, 23], sizes = [8, 1], strides = [1, 1]} : vector<8x48xi32> to vector<8x1xi32>
    %152 = vector.broadcast %151 : vector<8x1xi32> to vector<8x128xi32>
    %153 = arith.cmpi eq, %152, %0 : vector<8x128xi32>
    %154 = arith.extui %153 : vector<8x128xi1> to vector<8x128xi32>
    %155 = arith.sitofp %154 : vector<8x128xi32> to vector<8x128xf32>
    %156 = arith.addf %150, %155 : vector<8x128xf32>
    %157 = vector.extract_strided_slice %10 {offsets = [0, 24], sizes = [8, 1], strides = [1, 1]} : vector<8x48xi32> to vector<8x1xi32>
    %158 = vector.broadcast %157 : vector<8x1xi32> to vector<8x128xi32>
    %159 = arith.cmpi eq, %158, %0 : vector<8x128xi32>
    %160 = arith.extui %159 : vector<8x128xi1> to vector<8x128xi32>
    %161 = arith.sitofp %160 : vector<8x128xi32> to vector<8x128xf32>
    %162 = arith.addf %156, %161 : vector<8x128xf32>
    %163 = vector.extract_strided_slice %10 {offsets = [0, 25], sizes = [8, 1], strides = [1, 1]} : vector<8x48xi32> to vector<8x1xi32>
    %164 = vector.broadcast %163 : vector<8x1xi32> to vector<8x128xi32>
    %165 = arith.cmpi eq, %164, %0 : vector<8x128xi32>
    %166 = arith.extui %165 : vector<8x128xi1> to vector<8x128xi32>
    %167 = arith.sitofp %166 : vector<8x128xi32> to vector<8x128xf32>
    %168 = arith.addf %162, %167 : vector<8x128xf32>
    %169 = vector.extract_strided_slice %10 {offsets = [0, 26], sizes = [8, 1], strides = [1, 1]} : vector<8x48xi32> to vector<8x1xi32>
    %170 = vector.broadcast %169 : vector<8x1xi32> to vector<8x128xi32>
    %171 = arith.cmpi eq, %170, %0 : vector<8x128xi32>
    %172 = arith.extui %171 : vector<8x128xi1> to vector<8x128xi32>
    %173 = arith.sitofp %172 : vector<8x128xi32> to vector<8x128xf32>
    %174 = arith.addf %168, %173 : vector<8x128xf32>
    %175 = vector.extract_strided_slice %10 {offsets = [0, 27], sizes = [8, 1], strides = [1, 1]} : vector<8x48xi32> to vector<8x1xi32>
    %176 = vector.broadcast %175 : vector<8x1xi32> to vector<8x128xi32>
    %177 = arith.cmpi eq, %176, %0 : vector<8x128xi32>
    %178 = arith.extui %177 : vector<8x128xi1> to vector<8x128xi32>
    %179 = arith.sitofp %178 : vector<8x128xi32> to vector<8x128xf32>
    %180 = arith.addf %174, %179 : vector<8x128xf32>
    %181 = vector.extract_strided_slice %10 {offsets = [0, 28], sizes = [8, 1], strides = [1, 1]} : vector<8x48xi32> to vector<8x1xi32>
    %182 = vector.broadcast %181 : vector<8x1xi32> to vector<8x128xi32>
    %183 = arith.cmpi eq, %182, %0 : vector<8x128xi32>
    %184 = arith.extui %183 : vector<8x128xi1> to vector<8x128xi32>
    %185 = arith.sitofp %184 : vector<8x128xi32> to vector<8x128xf32>
    %186 = arith.addf %180, %185 : vector<8x128xf32>
    %187 = vector.extract_strided_slice %10 {offsets = [0, 29], sizes = [8, 1], strides = [1, 1]} : vector<8x48xi32> to vector<8x1xi32>
    %188 = vector.broadcast %187 : vector<8x1xi32> to vector<8x128xi32>
    %189 = arith.cmpi eq, %188, %0 : vector<8x128xi32>
    %190 = arith.extui %189 : vector<8x128xi1> to vector<8x128xi32>
    %191 = arith.sitofp %190 : vector<8x128xi32> to vector<8x128xf32>
    %192 = arith.addf %186, %191 : vector<8x128xf32>
    %193 = vector.extract_strided_slice %10 {offsets = [0, 30], sizes = [8, 1], strides = [1, 1]} : vector<8x48xi32> to vector<8x1xi32>
    %194 = vector.broadcast %193 : vector<8x1xi32> to vector<8x128xi32>
    %195 = arith.cmpi eq, %194, %0 : vector<8x128xi32>
    %196 = arith.extui %195 : vector<8x128xi1> to vector<8x128xi32>
    %197 = arith.sitofp %196 : vector<8x128xi32> to vector<8x128xf32>
    %198 = arith.addf %192, %197 : vector<8x128xf32>
    %199 = vector.extract_strided_slice %10 {offsets = [0, 31], sizes = [8, 1], strides = [1, 1]} : vector<8x48xi32> to vector<8x1xi32>
    %200 = vector.broadcast %199 : vector<8x1xi32> to vector<8x128xi32>
    %201 = arith.cmpi eq, %200, %0 : vector<8x128xi32>
    %202 = arith.extui %201 : vector<8x128xi1> to vector<8x128xi32>
    %203 = arith.sitofp %202 : vector<8x128xi32> to vector<8x128xf32>
    %204 = arith.addf %198, %203 : vector<8x128xf32>
    %205 = vector.extract_strided_slice %10 {offsets = [0, 32], sizes = [8, 1], strides = [1, 1]} : vector<8x48xi32> to vector<8x1xi32>
    %206 = vector.broadcast %205 : vector<8x1xi32> to vector<8x128xi32>
    %207 = arith.cmpi eq, %206, %0 : vector<8x128xi32>
    %208 = arith.extui %207 : vector<8x128xi1> to vector<8x128xi32>
    %209 = arith.sitofp %208 : vector<8x128xi32> to vector<8x128xf32>
    %210 = arith.addf %204, %209 : vector<8x128xf32>
    %211 = vector.extract_strided_slice %10 {offsets = [0, 33], sizes = [8, 1], strides = [1, 1]} : vector<8x48xi32> to vector<8x1xi32>
    %212 = vector.broadcast %211 : vector<8x1xi32> to vector<8x128xi32>
    %213 = arith.cmpi eq, %212, %0 : vector<8x128xi32>
    %214 = arith.extui %213 : vector<8x128xi1> to vector<8x128xi32>
    %215 = arith.sitofp %214 : vector<8x128xi32> to vector<8x128xf32>
    %216 = arith.addf %210, %215 : vector<8x128xf32>
    %217 = vector.extract_strided_slice %10 {offsets = [0, 34], sizes = [8, 1], strides = [1, 1]} : vector<8x48xi32> to vector<8x1xi32>
    %218 = vector.broadcast %217 : vector<8x1xi32> to vector<8x128xi32>
    %219 = arith.cmpi eq, %218, %0 : vector<8x128xi32>
    %220 = arith.extui %219 : vector<8x128xi1> to vector<8x128xi32>
    %221 = arith.sitofp %220 : vector<8x128xi32> to vector<8x128xf32>
    %222 = arith.addf %216, %221 : vector<8x128xf32>
    %223 = vector.extract_strided_slice %10 {offsets = [0, 35], sizes = [8, 1], strides = [1, 1]} : vector<8x48xi32> to vector<8x1xi32>
    %224 = vector.broadcast %223 : vector<8x1xi32> to vector<8x128xi32>
    %225 = arith.cmpi eq, %224, %0 : vector<8x128xi32>
    %226 = arith.extui %225 : vector<8x128xi1> to vector<8x128xi32>
    %227 = arith.sitofp %226 : vector<8x128xi32> to vector<8x128xf32>
    %228 = arith.addf %222, %227 : vector<8x128xf32>
    %229 = vector.extract_strided_slice %10 {offsets = [0, 36], sizes = [8, 1], strides = [1, 1]} : vector<8x48xi32> to vector<8x1xi32>
    %230 = vector.broadcast %229 : vector<8x1xi32> to vector<8x128xi32>
    %231 = arith.cmpi eq, %230, %0 : vector<8x128xi32>
    %232 = arith.extui %231 : vector<8x128xi1> to vector<8x128xi32>
    %233 = arith.sitofp %232 : vector<8x128xi32> to vector<8x128xf32>
    %234 = arith.addf %228, %233 : vector<8x128xf32>
    %235 = vector.extract_strided_slice %10 {offsets = [0, 37], sizes = [8, 1], strides = [1, 1]} : vector<8x48xi32> to vector<8x1xi32>
    %236 = vector.broadcast %235 : vector<8x1xi32> to vector<8x128xi32>
    %237 = arith.cmpi eq, %236, %0 : vector<8x128xi32>
    %238 = arith.extui %237 : vector<8x128xi1> to vector<8x128xi32>
    %239 = arith.sitofp %238 : vector<8x128xi32> to vector<8x128xf32>
    %240 = arith.addf %234, %239 : vector<8x128xf32>
    %241 = vector.extract_strided_slice %10 {offsets = [0, 38], sizes = [8, 1], strides = [1, 1]} : vector<8x48xi32> to vector<8x1xi32>
    %242 = vector.broadcast %241 : vector<8x1xi32> to vector<8x128xi32>
    %243 = arith.cmpi eq, %242, %0 : vector<8x128xi32>
    %244 = arith.extui %243 : vector<8x128xi1> to vector<8x128xi32>
    %245 = arith.sitofp %244 : vector<8x128xi32> to vector<8x128xf32>
    %246 = arith.addf %240, %245 : vector<8x128xf32>
    %247 = vector.extract_strided_slice %10 {offsets = [0, 39], sizes = [8, 1], strides = [1, 1]} : vector<8x48xi32> to vector<8x1xi32>
    %248 = vector.broadcast %247 : vector<8x1xi32> to vector<8x128xi32>
    %249 = arith.cmpi eq, %248, %0 : vector<8x128xi32>
    %250 = arith.extui %249 : vector<8x128xi1> to vector<8x128xi32>
    %251 = arith.sitofp %250 : vector<8x128xi32> to vector<8x128xf32>
    %252 = arith.addf %246, %251 : vector<8x128xf32>
    %253 = vector.extract_strided_slice %10 {offsets = [0, 40], sizes = [8, 1], strides = [1, 1]} : vector<8x48xi32> to vector<8x1xi32>
    %254 = vector.broadcast %253 : vector<8x1xi32> to vector<8x128xi32>
    %255 = arith.cmpi eq, %254, %0 : vector<8x128xi32>
    %256 = arith.extui %255 : vector<8x128xi1> to vector<8x128xi32>
    %257 = arith.sitofp %256 : vector<8x128xi32> to vector<8x128xf32>
    %258 = arith.addf %252, %257 : vector<8x128xf32>
    %259 = vector.extract_strided_slice %10 {offsets = [0, 41], sizes = [8, 1], strides = [1, 1]} : vector<8x48xi32> to vector<8x1xi32>
    %260 = vector.broadcast %259 : vector<8x1xi32> to vector<8x128xi32>
    %261 = arith.cmpi eq, %260, %0 : vector<8x128xi32>
    %262 = arith.extui %261 : vector<8x128xi1> to vector<8x128xi32>
    %263 = arith.sitofp %262 : vector<8x128xi32> to vector<8x128xf32>
    %264 = arith.addf %258, %263 : vector<8x128xf32>
    %265 = vector.extract_strided_slice %10 {offsets = [0, 42], sizes = [8, 1], strides = [1, 1]} : vector<8x48xi32> to vector<8x1xi32>
    %266 = vector.broadcast %265 : vector<8x1xi32> to vector<8x128xi32>
    %267 = arith.cmpi eq, %266, %0 : vector<8x128xi32>
    %268 = arith.extui %267 : vector<8x128xi1> to vector<8x128xi32>
    %269 = arith.sitofp %268 : vector<8x128xi32> to vector<8x128xf32>
    %270 = arith.addf %264, %269 : vector<8x128xf32>
    %271 = vector.extract_strided_slice %10 {offsets = [0, 43], sizes = [8, 1], strides = [1, 1]} : vector<8x48xi32> to vector<8x1xi32>
    %272 = vector.broadcast %271 : vector<8x1xi32> to vector<8x128xi32>
    %273 = arith.cmpi eq, %272, %0 : vector<8x128xi32>
    %274 = arith.extui %273 : vector<8x128xi1> to vector<8x128xi32>
    %275 = arith.sitofp %274 : vector<8x128xi32> to vector<8x128xf32>
    %276 = arith.addf %270, %275 : vector<8x128xf32>
    %277 = vector.extract_strided_slice %10 {offsets = [0, 44], sizes = [8, 1], strides = [1, 1]} : vector<8x48xi32> to vector<8x1xi32>
    %278 = vector.broadcast %277 : vector<8x1xi32> to vector<8x128xi32>
    %279 = arith.cmpi eq, %278, %0 : vector<8x128xi32>
    %280 = arith.extui %279 : vector<8x128xi1> to vector<8x128xi32>
    %281 = arith.sitofp %280 : vector<8x128xi32> to vector<8x128xf32>
    %282 = arith.addf %276, %281 : vector<8x128xf32>
    %283 = vector.extract_strided_slice %10 {offsets = [0, 45], sizes = [8, 1], strides = [1, 1]} : vector<8x48xi32> to vector<8x1xi32>
    %284 = vector.broadcast %283 : vector<8x1xi32> to vector<8x128xi32>
    %285 = arith.cmpi eq, %284, %0 : vector<8x128xi32>
    %286 = arith.extui %285 : vector<8x128xi1> to vector<8x128xi32>
    %287 = arith.sitofp %286 : vector<8x128xi32> to vector<8x128xf32>
    %288 = arith.addf %282, %287 : vector<8x128xf32>
    %289 = vector.extract_strided_slice %10 {offsets = [0, 46], sizes = [8, 1], strides = [1, 1]} : vector<8x48xi32> to vector<8x1xi32>
    %290 = vector.broadcast %289 : vector<8x1xi32> to vector<8x128xi32>
    %291 = arith.cmpi eq, %290, %0 : vector<8x128xi32>
    %292 = arith.extui %291 : vector<8x128xi1> to vector<8x128xi32>
    %293 = arith.sitofp %292 : vector<8x128xi32> to vector<8x128xf32>
    %294 = arith.addf %288, %293 : vector<8x128xf32>
    %295 = vector.extract_strided_slice %10 {offsets = [0, 47], sizes = [8, 1], strides = [1, 1]} : vector<8x48xi32> to vector<8x1xi32>
    %296 = vector.broadcast %295 : vector<8x1xi32> to vector<8x128xi32>
    %297 = arith.cmpi eq, %296, %0 : vector<8x128xi32>
    %298 = arith.extui %297 : vector<8x128xi1> to vector<8x128xi32>
    %299 = arith.sitofp %298 : vector<8x128xi32> to vector<8x128xf32>
    %300 = arith.addf %294, %299 : vector<8x128xf32>
    %cst_10 = arith.constant 0.000000e+00 : f32
    %301 = vector.broadcast %cst_10 : f32 to vector<8x128xf32>
    %302 = arith.minimumf %9, %301 : vector<8x128xf32>
    %303 = math.absf %9 : vector<8x128xf32>
    %cst_11 = arith.constant 0.000000e+00 : f32
    %304 = vector.broadcast %cst_11 : f32 to vector<8x128xf32>
    %305 = arith.subf %304, %303 : vector<8x128xf32>
    %306 = math.exp %305 : vector<8x128xf32>
    %307 = math.log1p %306 : vector<8x128xf32>
    %308 = arith.subf %302, %307 : vector<8x128xf32>
    %309 = arith.mulf %60, %308 : vector<8x128xf32>
    %cst_12 = arith.constant 0.000000e+00 : f32
    %310 = vector.broadcast %cst_12 : f32 to vector<8x128xf32>
    %311 = arith.subf %310, %9 : vector<8x128xf32>
    %cst_13 = arith.constant 0.000000e+00 : f32
    %312 = vector.broadcast %cst_13 : f32 to vector<8x128xf32>
    %313 = arith.minimumf %311, %312 : vector<8x128xf32>
    %314 = math.absf %311 : vector<8x128xf32>
    %cst_14 = arith.constant 0.000000e+00 : f32
    %315 = vector.broadcast %cst_14 : f32 to vector<8x128xf32>
    %316 = arith.subf %315, %314 : vector<8x128xf32>
    %317 = math.exp %316 : vector<8x128xf32>
    %318 = math.log1p %317 : vector<8x128xf32>
    %319 = arith.subf %313, %318 : vector<8x128xf32>
    %320 = arith.mulf %300, %319 : vector<8x128xf32>
    %321 = arith.addf %309, %320 : vector<8x128xf32>
    %cst_15 = arith.constant dense<0.000000e+00> : vector<8xf32>
    %322 = vector.multi_reduction <add>, %321, %cst_15 [1] : vector<8x128xf32> to vector<8xf32>
    %cst_16 = arith.constant 0.000000e+00 : f32
    %323 = vector.broadcast %cst_16 : f32 to vector<8xf32>
    %324 = arith.subf %323, %322 : vector<8xf32>
    %c0_17 = arith.constant 0 : index
    %c0_18 = arith.constant 0 : index
    %325 = vector.load %arg5[%c0_17, %c0_18] : memref<1x8xf32, #tpu.memory_space<vmem>>, vector<1x8xf32>
    %326 = vector.shape_cast %325 : vector<1x8xf32> to vector<8xf32>
    %327 = vector.shape_cast %324 : vector<8xf32> to vector<1x8xf32>
    tpu.vector_store %arg5[%c0_17, %c0_18], %327 {strides = array<i32>} : memref<1x8xf32, #tpu.memory_space<vmem>>, vector<1x8xf32>,
    return
  }
  func.func @transform_0(%arg0: i32) -> (i32, i32) {
    %c0_i32 = arith.constant 0 : i32
    %c0_i32_0 = arith.constant 0 : i32
    return %arg0, %c0_i32 : i32, i32
  }
  func.func @transform_1(%arg0: i32) -> (i32, i32) {
    %c0_i32 = arith.constant 0 : i32
    %c0_i32_0 = arith.constant 0 : i32
    return %arg0, %c0_i32 : i32, i32
  }
  func.func @transform_2(%arg0: i32) -> (i32, i32) {
    %c0_i32 = arith.constant 0 : i32
    %c0_i32_0 = arith.constant 0 : i32
    %c0_i32_1 = arith.constant 0 : i32
    return %c0_i32, %c0_i32_0 : i32, i32
  }
  func.func @transform_3(%arg0: i32) -> (i32, i32) {
    %c0_i32 = arith.constant 0 : i32
    %c0_i32_0 = arith.constant 0 : i32
    %c0_i32_1 = arith.constant 0 : i32
    return %c0_i32, %c0_i32_0 : i32, i32
  }
  func.func @transform_4(%arg0: i32) -> (i32, i32) {
    %c0_i32 = arith.constant 0 : i32
    %c0_i32_0 = arith.constant 0 : i32
    return %c0_i32, %arg0 : i32, i32
  }
}

</mosaic_0001>

<llo_original>
// kernel: tpu_custom_call.1
$region0: #{tpu_custom_call.1}
  #allocation0 [shape = 'u32[]', space=smem, size = 0x4, offset = 0x4, fixed_abs, tag = 'smem constant byte address 0x4 - core index']
  #allocation1 [shape = 'u32[144,128]{1,0:T(1,128)}', space=vmem, size = 0x12000, scoped, tag = 'internal scratch']
  %s0 = inlined_call_operand.vmem [shape: s32[8,1], index: 0, kind: input, shape index: {}]
  %s1 = inlined_call_operand.vmem [shape: s32[8,48], index: 1, kind: input, shape index: {}]
  %s2 = inlined_call_operand.vmem [shape: f32[128,32], index: 2, kind: input, shape index: {}]
  %s3 = inlined_call_operand.vmem [shape: f32[32,128], index: 3, kind: input, shape index: {}]
  %s4 = inlined_call_operand.hbm [shape: f32[1,8], index: 4, kind: output, shape index: {}]
  %s5 = sld [smem:[#allocation0]]
  $region26: #{tpu_custom_call.1} parent=0
    _
  %s7 = ssub.s32 1, %s5
  %s8 = scalar_select 0, %s7, %s5
  $region1: #{tpu_custom_call.1} parent=0
    #allocation2 [shape = 'u8[512]{0}', space=vmem, size = 0x400, scoped, tag = 'output window, operand 0, single buffered']
    #allocation3 [shape = 's32[1]{0}', space=sflag, size = 0x4, scoped, tag = 'scoped memory for tpu_custom_call.1']
    %9 = vsyncpa [#allocation3], 0
    // Predicated region
    $region2: #{tpu_custom_call.1} parent=1 // pred_check
      _
    $region3: #{tpu_custom_call.1} parent=1 // pred_check_branch
      %11 = sbr.rel (0) target = $region5
    $region4: #{tpu_custom_call.1} parent=1 // pred_region
      _
    $region5: #{tpu_custom_call.1} parent=1 // pred_fallthru
      _
    // Predicated region
    $region6: #{tpu_custom_call.1} parent=1 // pred_check
      _
    $region7: #{tpu_custom_call.1} parent=1 // pred_check_branch
      %13 = sbr.rel (0) target = $region9
    $region8: #{tpu_custom_call.1} parent=1 // pred_region
      _
    $region9: #{tpu_custom_call.1} parent=1 // pred_fallthru
      _
    // Predicated region
    $region10: #{tpu_custom_call.1} parent=1 // pred_check
      _
    $region11: #{tpu_custom_call.1} parent=1 // pred_check_branch
      %15 = sbr.rel (0) target = $region13
    $region12: #{tpu_custom_call.1} parent=1 // pred_region
      _
    $region13: #{tpu_custom_call.1} parent=1 // pred_fallthru
      _
    // Predicated region
    $region14: #{tpu_custom_call.1} parent=1 // pred_check
      _
    $region15: #{tpu_custom_call.1} parent=1 // pred_check_branch
      %17 = sbr.rel (0) target = $region17
    $region16: #{tpu_custom_call.1} parent=1 // pred_region
      _
    $region17: #{tpu_custom_call.1} parent=1 // pred_fallthru
      _
    %v18 = vlaneseq
    %v19 = vand.u32 %v18, 127
    %v20 = vld [vmem:[%s0] sm:$0xff]
    %21 = vset.pattern.permute.xlu0 0
    %22 = vperm.xlu0 %21, %v20
    %v23 = vpop.permute.xlu0 %22
    %vm24 = vcmp.eq.s32.totalorder %v23, %v19
    %v25 = vsel %vm24, 1, 0
    %v26 = vcvt.s32.f32 %v25
    %v27 = vld [vmem:[%s2] sm:$0xff]
    %v28 = vld [vmem:[%s2 + $0x8] sm:$0xff]
    %v29 = vld [vmem:[%s2 + $0x10] sm:$0xff]
    %v30 = vld [vmem:[%s2 + $0x18] sm:$0xff]
    %v31 = vld [vmem:[%s2 + $0x20] sm:$0xff]
    %v32 = vld [vmem:[%s2 + $0x28] sm:$0xff]
    %v33 = vld [vmem:[%s2 + $0x30] sm:$0xff]
    %v34 = vld [vmem:[%s2 + $0x38] sm:$0xff]
    %v35 = vld [vmem:[%s2 + $0x40] sm:$0xff]
    %v36 = vld [vmem:[%s2 + $0x48] sm:$0xff]
    %v37 = vld [vmem:[%s2 + $0x50] sm:$0xff]
    %v38 = vld [vmem:[%s2 + $0x58] sm:$0xff]
    %v39 = vld [vmem:[%s2 + $0x60] sm:$0xff]
    %v40 = vld [vmem:[%s2 + $0x68] sm:$0xff]
    %v41 = vld [vmem:[%s2 + $0x70] sm:$0xff]
    %v42 = vld [vmem:[%s2 + $0x78] sm:$0xff]
    %43 = vmatprep.subr.mxu0 0.0
    %44 = vmatpush1.msra.mxu0 %v27
    %45 = vmatprep.subr.mxu0 0.0
    %46 = vmatpush1.msra.mxu0 %v28
    %47 = vmatprep.subr.mxu0 0.0
    %48 = vmatpush1.msra.mxu0 %v29
    %49 = vmatprep.subr.mxu0 0.0
    %50 = vmatpush1.msra.mxu0 %v30
    %51 = vmatprep.subr.mxu0 0.0
    %52 = vmatpush1.msra.mxu0 %v31
    %53 = vmatprep.subr.mxu0 0.0
    %54 = vmatpush1.msra.mxu0 %v32
    %55 = vmatprep.subr.mxu0 0.0
    %56 = vmatpush1.msra.mxu0 %v33
    %57 = vmatprep.subr.mxu0 0.0
    %58 = vmatpush1.msra.mxu0 %v34
    %59 = vmatprep.subr.mxu0 0.0
    %60 = vmatpush1.msra.mxu0 %v35
    %61 = vmatprep.subr.mxu0 0.0
    %62 = vmatpush1.msra.mxu0 %v36
    %63 = vmatprep.subr.mxu0 0.0
    %64 = vmatpush1.msra.mxu0 %v37
    %65 = vmatprep.subr.mxu0 0.0
    %66 = vmatpush1.msra.mxu0 %v38
    %67 = vmatprep.subr.mxu0 0.0
    %68 = vmatpush1.msra.mxu0 %v39
    %69 = vmatprep.subr.mxu0 0.0
    %70 = vmatpush1.msra.mxu0 %v40
    %71 = vmatprep.subr.mxu0 0.0
    %72 = vmatpush1.msra.mxu0 %v41
    %73 = vmatprep.subr.mxu0 0.0
    %74 = vmatpush1.msra.mxu0 %v42
    %75 = vmatprep.subr.mxu0 0.0
    %76 = vmatpush1.msra.mxu0 0.0
    %77 = vmatprep.subr.mxu0 0.0
    %78 = vmatpush1.msra.mxu0 0.0
    %79 = vmatprep.subr.mxu0 0.0
    %80 = vmatpush1.msra.mxu0 0.0
    %81 = vmatprep.subr.mxu0 0.0
    %82 = vmatpush1.msra.mxu0 0.0
    %83 = vmatprep.subr.mxu0 0.0
    %84 = vmatpush1.msra.mxu0 0.0
    %85 = vmatprep.subr.mxu0 0.0
    %86 = vmatpush1.msra.mxu0 0.0
    %87 = vmatprep.subr.mxu0 0.0
    %88 = vmatpush1.msra.mxu0 0.0
    %89 = vmatprep.subr.mxu0 0.0
    %90 = vmatpush1.msra.mxu0 0.0
    %91 = vmatprep.subr.mxu0 0.0
    %92 = vmatpush1.msra.mxu0 0.0
    %93 = vmatprep.subr.mxu0 0.0
    %94 = vmatpush1.msra.mxu0 0.0
    %95 = vmatprep.subr.mxu0 0.0
    %96 = vmatpush1.msra.mxu0 0.0
    %97 = vmatprep.subr.mxu0 0.0
    %98 = vmatpush1.msra.mxu0 0.0
    %99 = vmatprep.subr.mxu0 0.0
    %100 = vmatpush1.msra.mxu0 0.0
    %101 = vmatprep.subr.mxu0 0.0
    %102 = vmatpush1.msra.mxu0 0.0
    %103 = vmatprep.subr.mxu0 0.0
    %104 = vmatpush1.msra.mxu0 0.0
    %105 = vmatprep.subr.mxu0 0.0
    %106 = vmatpush1.msra.mxu0 0.0
    %107 = vmatprep.mubr.f32.mxu0 0.0
    %108 = vmatmul.mubr.f32.gmra.mrb[0].mxu0 %v26
    %v109 = vpop.f32.mrb[0].mxu0
    %v110 = vadd.f32 0.0, %v109
    %v111 = vpop.f32.mrb[0].mxu0
    %112 = vdwg.mxu0
    %v113 = vld [vmem:[%s3] sm:$0xff]
    %v114 = vld [vmem:[%s3 + $0x8] sm:$0xff]
    %v115 = vld [vmem:[%s3 + $0x10] sm:$0xff]
    %v116 = vld [vmem:[%s3 + $0x18] sm:$0xff]
    %vm117 = vcmask 261120
    %v119 = vsel %vm117, %v110, 0
    %121 = vmatprep.subr.mxu0 0.0
    %122 = vmatpush1.msra.mxu0 %v113
    %123 = vmatprep.subr.mxu0 0.0
    %124 = vmatpush1.msra.mxu0 %v114
    %125 = vmatprep.subr.mxu0 0.0
    %126 = vmatpush1.msra.mxu0 %v115
    %127 = vmatprep.subr.mxu0 0.0
    %128 = vmatpush1.msra.mxu0 %v116
    %129 = vmatprep.subr.mxu0 0.0
    %130 = vmatpush1.msra.mxu0 0.0
    %131 = vmatprep.subr.mxu0 0.0
    %132 = vmatpush1.msra.mxu0 0.0
    %133 = vmatprep.subr.mxu0 0.0
    %134 = vmatpush1.msra.mxu0 0.0
    %135 = vmatprep.subr.mxu0 0.0
    %136 = vmatpush1.msra.mxu0 0.0
    %137 = vmatprep.subr.mxu0 0.0
    %138 = vmatpush1.msra.mxu0 0.0
    %139 = vmatprep.subr.mxu0 0.0
    %140 = vmatpush1.msra.mxu0 0.0
    %141 = vmatprep.subr.mxu0 0.0
    %142 = vmatpush1.msra.mxu0 0.0
    %143 = vmatprep.subr.mxu0 0.0
    %144 = vmatpush1.msra.mxu0 0.0
    %145 = vmatprep.subr.mxu0 0.0
    %146 = vmatpush1.msra.mxu0 0.0
    %147 = vmatprep.subr.mxu0 0.0
    %148 = vmatpush1.msra.mxu0 0.0
    %149 = vmatprep.subr.mxu0 0.0
    %150 = vmatpush1.msra.mxu0 0.0
    %151 = vmatprep.subr.mxu0 0.0
    %152 = vmatpush1.msra.mxu0 0.0
    %153 = vmatprep.subr.mxu0 0.0
    %154 = vmatpush1.msra.mxu0 0.0
    %155 = vmatprep.subr.mxu0 0.0
    %156 = vmatpush1.msra.mxu0 0.0
    %157 = vmatprep.subr.mxu0 0.0
    %158 = vmatpush1.msra.mxu0 0.0
    %159 = vmatprep.subr.mxu0 0.0
    %160 = vmatpush1.msra.mxu0 0.0
    %161 = vmatprep.subr.mxu0 0.0
    %162 = vmatpush1.msra.mxu0 0.0
    %163 = vmatprep.subr.mxu0 0.0
    %164 = vmatpush1.msra.mxu0 0.0
    %165 = vmatprep.subr.mxu0 0.0
    %166 = vmatpush1.msra.mxu0 0.0
    %167 = vmatprep.subr.mxu0 0.0
    %168 = vmatpush1.msra.mxu0 0.0
    %169 = vmatprep.subr.mxu0 0.0
    %170 = vmatpush1.msra.mxu0 0.0
    %171 = vmatprep.subr.mxu0 0.0
    %172 = vmatpush1.msra.mxu0 0.0
    %173 = vmatprep.subr.mxu0 0.0
    %174 = vmatpush1.msra.mxu0 0.0
    %175 = vmatprep.subr.mxu0 0.0
    %176 = vmatpush1.msra.mxu0 0.0
    %177 = vmatprep.subr.mxu0 0.0
    %178 = vmatpush1.msra.mxu0 0.0
    %179 = vmatprep.subr.mxu0 0.0
    %180 = vmatpush1.msra.mxu0 0.0
    %181 = vmatprep.subr.mxu0 0.0
    %182 = vmatpush1.msra.mxu0 0.0
    %183 = vmatprep.subr.mxu0 0.0
    %184 = vmatpush1.msra.mxu0 0.0
    %185 = vmatprep.mubr.f32.mxu0 0.0
    %186 = vmatmul.mubr.f32.gmra.mrb[0].mxu0 %v119
    %v187 = vpop.f32.mrb[0].mxu0
    %v188 = vadd.f32 0.0, %v187
    %v189 = vpop.f32.mrb[0].mxu0
    %190 = vdwg.mxu0
    %v191 = vld [vmem:[%s1] sm:$0xff]
    %192 = vset.pattern.permute.xlu0 0
    %193 = vperm.xlu0 %192, %v191
    %v194 = vpop.permute.xlu0 %193
    %vm195 = vcmp.eq.s32.totalorder %v194, %v19
    %v196 = vsel %vm195, 1, 0
    %v197 = vcvt.s32.f32 %v196
    %v198 = vadd.f32 %v197, 0.0
    %199 = vset.pattern.permute.xlu0 1
    %200 = vperm.xlu0 %199, %v191
    %v201 = vpop.permute.xlu0 %200
    %vm202 = vcmp.eq.s32.totalorder %v201, %v19
    %v203 = vsel %vm202, 1, 0
    %v204 = vcvt.s32.f32 %v203
    %v205 = vadd.f32 %v198, %v204
    %206 = vset.pattern.permute.xlu0 2
    %207 = vperm.xlu0 %206, %v191
    %v208 = vpop.permute.xlu0 %207
    %vm209 = vcmp.eq.s32.totalorder %v208, %v19
    %v210 = vsel %vm209, 1, 0
    %v211 = vcvt.s32.f32 %v210
    %v212 = vadd.f32 %v205, %v211
    %213 = vset.pattern.permute.xlu0 3
    %214 = vperm.xlu0 %213, %v191
    %v215 = vpop.permute.xlu0 %214
    %vm216 = vcmp.eq.s32.totalorder %v215, %v19
    %v217 = vsel %vm216, 1, 0
    %v218 = vcvt.s32.f32 %v217
    %v219 = vadd.f32 %v212, %v218
    %220 = vset.pattern.permute.xlu0 4
    %221 = vperm.xlu0 %220, %v191
    %v222 = vpop.permute.xlu0 %221
    %vm223 = vcmp.eq.s32.totalorder %v222, %v19
    %v224 = vsel %vm223, 1, 0
    %v225 = vcvt.s32.f32 %v224
    %v226 = vadd.f32 %v219, %v225
    %227 = vset.pattern.permute.xlu0 5
    %228 = vperm.xlu0 %227, %v191
    %v229 = vpop.permute.xlu0 %228
    %vm230 = vcmp.eq.s32.totalorder %v229, %v19
    %v231 = vsel %vm230, 1, 0
    %v232 = vcvt.s32.f32 %v231
    %v233 = vadd.f32 %v226, %v232
    %234 = vset.pattern.permute.xlu0 6
    %235 = vperm.xlu0 %234, %v191
    %v236 = vpop.permute.xlu0 %235
    %vm237 = vcmp.eq.s32.totalorder %v236, %v19
    %v238 = vsel %vm237, 1, 0
    %v239 = vcvt.s32.f32 %v238
    %v240 = vadd.f32 %v233, %v239
    %241 = vset.pattern.permute.xlu0 7
    %242 = vperm.xlu0 %241, %v191
    %v243 = vpop.permute.xlu0 %242
    %vm244 = vcmp.eq.s32.totalorder %v243, %v19
    %v245 = vsel %vm244, 1, 0
    %v246 = vcvt.s32.f32 %v245
    %v247 = vadd.f32 %v240, %v246
    %248 = vset.pattern.permute.xlu0 8
    %249 = vperm.xlu0 %248, %v191
    %v250 = vpop.permute.xlu0 %249
    %vm251 = vcmp.eq.s32.totalorder %v250, %v19
    %v252 = vsel %vm251, 1, 0
    %v253 = vcvt.s32.f32 %v252
    %v254 = vadd.f32 %v253, 0.0
    %255 = vset.pattern.permute.xlu0 9
    %256 = vperm.xlu0 %255, %v191
    %v257 = vpop.permute.xlu0 %256
    %vm258 = vcmp.eq.s32.totalorder %v257, %v19
    %v259 = vsel %vm258, 1, 0
    %v260 = vcvt.s32.f32 %v259
    %v261 = vadd.f32 %v254, %v260
    %262 = vset.pattern.permute.xlu0 10
    %263 = vperm.xlu0 %262, %v191
    %v264 = vpop.permute.xlu0 %263
    %vm265 = vcmp.eq.s32.totalorder %v264, %v19
    %v266 = vsel %vm265, 1, 0
    %v267 = vcvt.s32.f32 %v266
    %v268 = vadd.f32 %v261, %v267
    %269 = vset.pattern.permute.xlu0 11
    %270 = vperm.xlu0 %269, %v191
    %v271 = vpop.permute.xlu0 %270
    %vm272 = vcmp.eq.s32.totalorder %v271, %v19
    %v273 = vsel %vm272, 1, 0
    %v274 = vcvt.s32.f32 %v273
    %v275 = vadd.f32 %v268, %v274
    %276 = vset.pattern.permute.xlu0 12
    %277 = vperm.xlu0 %276, %v191
    %v278 = vpop.permute.xlu0 %277
    %vm279 = vcmp.eq.s32.totalorder %v278, %v19
    %v280 = vsel %vm279, 1, 0
    %v281 = vcvt.s32.f32 %v280
    %v282 = vadd.f32 %v275, %v281
    %283 = vset.pattern.permute.xlu0 13
    %284 = vperm.xlu0 %283, %v191
    %v285 = vpop.permute.xlu0 %284
    %vm286 = vcmp.eq.s32.totalorder %v285, %v19
    %v287 = vsel %vm286, 1, 0
    %v288 = vcvt.s32.f32 %v287
    %v289 = vadd.f32 %v282, %v288
    %290 = vset.pattern.permute.xlu0 14
    %291 = vperm.xlu0 %290, %v191
    %v292 = vpop.permute.xlu0 %291
    %vm293 = vcmp.eq.s32.totalorder %v292, %v19
    %v294 = vsel %vm293, 1, 0
    %v295 = vcvt.s32.f32 %v294
    %v296 = vadd.f32 %v289, %v295
    %297 = vset.pattern.permute.xlu0 15
    %298 = vperm.xlu0 %297, %v191
    %v299 = vpop.permute.xlu0 %298
    %vm300 = vcmp.eq.s32.totalorder %v299, %v19
    %v301 = vsel %vm300, 1, 0
    %v302 = vcvt.s32.f32 %v301
    %v303 = vadd.f32 %v296, %v302
    %304 = vset.pattern.permute.xlu0 16
    %305 = vperm.xlu0 %304, %v191
    %v306 = vpop.permute.xlu0 %305
    %vm307 = vcmp.eq.s32.totalorder %v306, %v19
    %v308 = vsel %vm307, 1, 0
    %v309 = vcvt.s32.f32 %v308
    %v310 = vadd.f32 %v303, %v309
    %311 = vset.pattern.permute.xlu0 17
    %312 = vperm.xlu0 %311, %v191
    %v313 = vpop.permute.xlu0 %312
    %vm314 = vcmp.eq.s32.totalorder %v313, %v19
    %v315 = vsel %vm314, 1, 0
    %v316 = vcvt.s32.f32 %v315
    %v317 = vadd.f32 %v310, %v316
    %318 = vset.pattern.permute.xlu0 18
    %319 = vperm.xlu0 %318, %v191
    %v320 = vpop.permute.xlu0 %319
    %vm321 = vcmp.eq.s32.totalorder %v320, %v19
    %v322 = vsel %vm321, 1, 0
    %v323 = vcvt.s32.f32 %v322
    %v324 = vadd.f32 %v317, %v323
    %325 = vset.pattern.permute.xlu0 19
    %326 = vperm.xlu0 %325, %v191
    %v327 = vpop.permute.xlu0 %326
    %vm328 = vcmp.eq.s32.totalorder %v327, %v19
    %v329 = vsel %vm328, 1, 0
    %v330 = vcvt.s32.f32 %v329
    %v331 = vadd.f32 %v324, %v330
    %332 = vset.pattern.permute.xlu0 20
    %333 = vperm.xlu0 %332, %v191
    %v334 = vpop.permute.xlu0 %333
    %vm335 = vcmp.eq.s32.totalorder %v334, %v19
    %v336 = vsel %vm335, 1, 0
    %v337 = vcvt.s32.f32 %v336
    %v338 = vadd.f32 %v331, %v337
    %339 = vset.pattern.permute.xlu0 21
    %340 = vperm.xlu0 %339, %v191
    %v341 = vpop.permute.xlu0 %340
    %vm342 = vcmp.eq.s32.totalorder %v341, %v19
    %v343 = vsel %vm342, 1, 0
    %v344 = vcvt.s32.f32 %v343
    %v345 = vadd.f32 %v338, %v344
    %346 = vset.pattern.permute.xlu0 22
    %347 = vperm.xlu0 %346, %v191
    %v348 = vpop.permute.xlu0 %347
    %vm349 = vcmp.eq.s32.totalorder %v348, %v19
    %v350 = vsel %vm349, 1, 0
    %v351 = vcvt.s32.f32 %v350
    %v352 = vadd.f32 %v345, %v351
    %353 = vset.pattern.permute.xlu0 23
    %354 = vperm.xlu0 %353, %v191
    %v355 = vpop.permute.xlu0 %354
    %vm356 = vcmp.eq.s32.totalorder %v355, %v19
    %v357 = vsel %vm356, 1, 0
    %v358 = vcvt.s32.f32 %v357
    %v359 = vadd.f32 %v352, %v358
    %360 = vset.pattern.permute.xlu0 24
    %361 = vperm.xlu0 %360, %v191
    %v362 = vpop.permute.xlu0 %361
    %vm363 = vcmp.eq.s32.totalorder %v362, %v19
    %v364 = vsel %vm363, 1, 0
    %v365 = vcvt.s32.f32 %v364
    %v366 = vadd.f32 %v359, %v365
    %367 = vset.pattern.permute.xlu0 25
    %368 = vperm.xlu0 %367, %v191
    %v369 = vpop.permute.xlu0 %368
    %vm370 = vcmp.eq.s32.totalorder %v369, %v19
    %v371 = vsel %vm370, 1, 0
    %v372 = vcvt.s32.f32 %v371
    %v373 = vadd.f32 %v366, %v372
    %374 = vset.pattern.permute.xlu0 26
    %375 = vperm.xlu0 %374, %v191
    %v376 = vpop.permute.xlu0 %375
    %vm377 = vcmp.eq.s32.totalorder %v376, %v19
    %v378 = vsel %vm377, 1, 0
    %v379 = vcvt.s32.f32 %v378
    %v380 = vadd.f32 %v373, %v379
    %381 = vset.pattern.permute.xlu0 27
    %382 = vperm.xlu0 %381, %v191
    %v383 = vpop.permute.xlu0 %382
    %vm384 = vcmp.eq.s32.totalorder %v383, %v19
    %v385 = vsel %vm384, 1, 0
    %v386 = vcvt.s32.f32 %v385
    %v387 = vadd.f32 %v380, %v386
    %388 = vset.pattern.permute.xlu0 28
    %389 = vperm.xlu0 %388, %v191
    %v390 = vpop.permute.xlu0 %389
    %vm391 = vcmp.eq.s32.totalorder %v390, %v19
    %v392 = vsel %vm391, 1, 0
    %v393 = vcvt.s32.f32 %v392
    %v394 = vadd.f32 %v387, %v393
    %395 = vset.pattern.permute.xlu0 29
    %396 = vperm.xlu0 %395, %v191
    %v397 = vpop.permute.xlu0 %396
    %vm398 = vcmp.eq.s32.totalorder %v397, %v19
    %v399 = vsel %vm398, 1, 0
    %v400 = vcvt.s32.f32 %v399
    %v401 = vadd.f32 %v394, %v400
    %402 = vset.pattern.permute.xlu0 30
    %403 = vperm.xlu0 %402, %v191
    %v404 = vpop.permute.xlu0 %403
    %vm405 = vcmp.eq.s32.totalorder %v404, %v19
    %v406 = vsel %vm405, 1, 0
    %v407 = vcvt.s32.f32 %v406
    %v408 = vadd.f32 %v401, %v407
    %409 = vset.pattern.permute.xlu0 31
    %410 = vperm.xlu0 %409, %v191
    %v411 = vpop.permute.xlu0 %410
    %vm412 = vcmp.eq.s32.totalorder %v411, %v19
    %v413 = vsel %vm412, 1, 0
    %v414 = vcvt.s32.f32 %v413
    %v415 = vadd.f32 %v408, %v414
    %416 = vset.pattern.permute.xlu0 32
    %417 = vperm.xlu0 %416, %v191
    %v418 = vpop.permute.xlu0 %417
    %vm419 = vcmp.eq.s32.totalorder %v418, %v19
    %v420 = vsel %vm419, 1, 0
    %v421 = vcvt.s32.f32 %v420
    %v422 = vadd.f32 %v415, %v421
    %423 = vset.pattern.permute.xlu0 33
    %424 = vperm.xlu0 %423, %v191
    %v425 = vpop.permute.xlu0 %424
    %vm426 = vcmp.eq.s32.totalorder %v425, %v19
    %v427 = vsel %vm426, 1, 0
    %v428 = vcvt.s32.f32 %v427
    %v429 = vadd.f32 %v422, %v428
    %430 = vset.pattern.permute.xlu0 34
    %431 = vperm.xlu0 %430, %v191
    %v432 = vpop.permute.xlu0 %431
    %vm433 = vcmp.eq.s32.totalorder %v432, %v19
    %v434 = vsel %vm433, 1, 0
    %v435 = vcvt.s32.f32 %v434
    %v436 = vadd.f32 %v429, %v435
    %437 = vset.pattern.permute.xlu0 35
    %438 = vperm.xlu0 %437, %v191
    %v439 = vpop.permute.xlu0 %438
    %vm440 = vcmp.eq.s32.totalorder %v439, %v19
    %v441 = vsel %vm440, 1, 0
    %v442 = vcvt.s32.f32 %v441
    %v443 = vadd.f32 %v436, %v442
    %444 = vset.pattern.permute.xlu0 36
    %445 = vperm.xlu0 %444, %v191
    %v446 = vpop.permute.xlu0 %445
    %vm447 = vcmp.eq.s32.totalorder %v446, %v19
    %v448 = vsel %vm447, 1, 0
    %v449 = vcvt.s32.f32 %v448
    %v450 = vadd.f32 %v443, %v449
    %451 = vset.pattern.permute.xlu0 37
    %452 = vperm.xlu0 %451, %v191
    %v453 = vpop.permute.xlu0 %452
    %vm454 = vcmp.eq.s32.totalorder %v453, %v19
    %v455 = vsel %vm454, 1, 0
    %v456 = vcvt.s32.f32 %v455
    %v457 = vadd.f32 %v450, %v456
    %458 = vset.pattern.permute.xlu0 38
    %459 = vperm.xlu0 %458, %v191
    %v460 = vpop.permute.xlu0 %459
    %vm461 = vcmp.eq.s32.totalorder %v460, %v19
    %v462 = vsel %vm461, 1, 0
    %v463 = vcvt.s32.f32 %v462
    %v464 = vadd.f32 %v457, %v463
    %465 = vset.pattern.permute.xlu0 39
    %466 = vperm.xlu0 %465, %v191
    %v467 = vpop.permute.xlu0 %466
    %vm468 = vcmp.eq.s32.totalorder %v467, %v19
    %v469 = vsel %vm468, 1, 0
    %v470 = vcvt.s32.f32 %v469
    %v471 = vadd.f32 %v464, %v470
    %472 = vset.pattern.permute.xlu0 40
    %473 = vperm.xlu0 %472, %v191
    %v474 = vpop.permute.xlu0 %473
    %vm475 = vcmp.eq.s32.totalorder %v474, %v19
    %v476 = vsel %vm475, 1, 0
    %v477 = vcvt.s32.f32 %v476
    %v478 = vadd.f32 %v471, %v477
    %479 = vset.pattern.permute.xlu0 41
    %480 = vperm.xlu0 %479, %v191
    %v481 = vpop.permute.xlu0 %480
    %vm482 = vcmp.eq.s32.totalorder %v481, %v19
    %v483 = vsel %vm482, 1, 0
    %v484 = vcvt.s32.f32 %v483
    %v485 = vadd.f32 %v478, %v484
    %486 = vset.pattern.permute.xlu0 42
    %487 = vperm.xlu0 %486, %v191
    %v488 = vpop.permute.xlu0 %487
    %vm489 = vcmp.eq.s32.totalorder %v488, %v19
    %v490 = vsel %vm489, 1, 0
    %v491 = vcvt.s32.f32 %v490
    %v492 = vadd.f32 %v485, %v491
    %493 = vset.pattern.permute.xlu0 43
    %494 = vperm.xlu0 %493, %v191
    %v495 = vpop.permute.xlu0 %494
    %vm496 = vcmp.eq.s32.totalorder %v495, %v19
    %v497 = vsel %vm496, 1, 0
    %v498 = vcvt.s32.f32 %v497
    %v499 = vadd.f32 %v492, %v498
    %500 = vset.pattern.permute.xlu0 44
    %501 = vperm.xlu0 %500, %v191
    %v502 = vpop.permute.xlu0 %501
    %vm503 = vcmp.eq.s32.totalorder %v502, %v19
    %v504 = vsel %vm503, 1, 0
    %v505 = vcvt.s32.f32 %v504
    %v506 = vadd.f32 %v499, %v505
    %507 = vset.pattern.permute.xlu0 45
    %508 = vperm.xlu0 %507, %v191
    %v509 = vpop.permute.xlu0 %508
    %vm510 = vcmp.eq.s32.totalorder %v509, %v19
    %v511 = vsel %vm510, 1, 0
    %v512 = vcvt.s32.f32 %v511
    %v513 = vadd.f32 %v506, %v512
    %514 = vset.pattern.permute.xlu0 46
    %515 = vperm.xlu0 %514, %v191
    %v516 = vpop.permute.xlu0 %515
    %vm517 = vcmp.eq.s32.totalorder %v516, %v19
    %v518 = vsel %vm517, 1, 0
    %v519 = vcvt.s32.f32 %v518
    %v520 = vadd.f32 %v513, %v519
    %521 = vset.pattern.permute.xlu0 47
    %522 = vperm.xlu0 %521, %v191
    %v523 = vpop.permute.xlu0 %522
    %vm524 = vcmp.eq.s32.totalorder %v523, %v19
    %v525 = vsel %vm524, 1, 0
    %v526 = vcvt.s32.f32 %v525
    %v527 = vadd.f32 %v520, %v526
    %v528 = vmin.f32 %v188, 0.0
    %v529 = vand.u32 2147483647, %v188
    %v530 = vsub.f32 0.0, %v529
    %v531 = vmul.f32 %v530, 1.442695
    %v532 = vpow.pop %v531
    %v533 = vadd.f32 %v532, 1.0
    %v534 = vlog2.pop %v533
    %v535 = vmul.f32 %v534, 0.6931472
    %v536 = vmul.f32 -0.5, %v532
    %v537 = vadd.f32 %v536, 1.0
    %v538 = vmul.f32 %v537, %v532
    %v539 = vand.u32 2147483647, %v532
    %vm540 = vcmp.lt.f32.partialorder %v539, 0.0004427343
    %v541 = vsel %vm540, %v538, %v535
    %v542 = vsub.f32 %v528, %v541
    %v543 = vmul.f32 %v247, %v542
    %v544 = vsub.f32 0.0, %v188
    %v545 = vmin.f32 %v544, 0.0
    %v546 = vand.u32 2147483647, %v544
    %v547 = vsub.f32 0.0, %v546
    %v548 = vmul.f32 %v547, 1.442695
    %v549 = vpow.pop %v548
    %v550 = vadd.f32 %v549, 1.0
    %v551 = vlog2.pop %v550
    %v552 = vmul.f32 %v551, 0.6931472
    %v553 = vmul.f32 -0.5, %v549
    %v554 = vadd.f32 %v553, 1.0
    %v555 = vmul.f32 %v554, %v549
    %v556 = vand.u32 2147483647, %v549
    %vm557 = vcmp.lt.f32.partialorder %v556, 0.0004427343
    %v558 = vsel %vm557, %v555, %v552
    %v559 = vsub.f32 %v545, %v558
    %v560 = vmul.f32 %v527, %v559
    %v561 = vadd.f32 %v543, %v560
    %562 = vadd.xlane.f32.xlu0 %v561
    %v563 = vpop.xlane.xlu0 %562
    %v564 = vsub.f32 0.0, %v563
    %v566 = vlaneseq
    %v567 = vshrl.u32 %v566, 7
    %v568 = vsub.s32 %v19, %v567
    %v569 = vrot.slane %v564, %v568
    %vm571 = vcmask 57344
    %572 = vst.msk [vmem:[#allocation2] sm:$0x1] %vm571, %v569
    // Predicated region
    $region18: #{tpu_custom_call.1} parent=1 // pred_check
      _
    $region19: #{tpu_custom_call.1} parent=1 // pred_check_branch
      %574 = sbr.rel (0) target = $region21
    $region20: #{tpu_custom_call.1} parent=1 // pred_region
      %s576 = ssub.s32 16, 16
      %577 = vsyncadd [#allocation3], %s576
      %s579 = sshll.u32 [#allocation2], 4
      %s580 = int_to_ptr.vmem [resolvable:$true] %s579
      %582 = dma.vmem_to_hbm [thread:$0]  %s580, 16, %s4, [#allocation3]
    $region21: #{tpu_custom_call.1} parent=1 // pred_fallthru
      _
    // Predicated region
    $region22: #{tpu_custom_call.1} parent=1 // pred_check
      _
    $region23: #{tpu_custom_call.1} parent=1 // pred_check_branch
      %584 = sbr.rel (0) target = $region25
    $region24: #{tpu_custom_call.1} parent=1 // pred_region
      %585 = dma.done [#allocation3], 16
    $region25: #{tpu_custom_call.1} parent=1 // pred_fallthru
      _
    %586 = vsyncpa [#allocation3], 1

</llo_original>
